<compile_context>
chip_gen: v7x
topology: tpu7x:2x2x1
jax: 0.10.0
libtpu: 0.0.40
codegen_flags: <defaults>
</compile_context>

<pallas_src>
import jax
import jax.numpy as jnp
from jax.experimental import pallas as pl
from jax.experimental.pallas import tpu as pltpu


def _round_up(x, m):
    return ((x + m - 1) // m) * m


def _pick_tb(B):
    """Batch tile: big tiles for big batches, >=2 tiles for v7x megacore sharding."""
    if B < 128:
        return _round_up(B, 8)                     # single tile, sublane-aligned
    if B < 1024:
        return min(512, _round_up(-(-B // 2), 8))  # >=2 tiles -> both TCs on v7x
    return 512


def _actor_critic_kernel(x_ref, w1_ref, b1_ref, w2_ref, b2_ref, wh_ref, bh_ref, out_ref):
    # shared = Linear(S,128) -> ReLU -> Linear(128,256) -> ReLU
    # bf16 MXU operands, f32 accumulate; bias/ReLU in f32.
    x = x_ref[...].astype(jnp.bfloat16)
    h1 = jnp.dot(x, w1_ref[...], preferred_element_type=jnp.float32) + b1_ref[...]
    h1 = jnp.maximum(h1, 0.0).astype(jnp.bfloat16)
    h2 = jnp.dot(h1, w2_ref[...], preferred_element_type=jnp.float32) + b2_ref[...]
    h2 = jnp.maximum(h2, 0.0).astype(jnp.bfloat16)
    # fused head: [actor | critic | zero-pad] -> single lane-dense (TB, HEAD_PAD) store
    out_ref[...] = jnp.dot(h2, wh_ref[...], preferred_element_type=jnp.float32) + bh_ref[...]


def pack_params(params):
    """One-time (outside jit) packing: transpose to (in,out), fuse+pad heads, bf16 weights."""
    A = params["actor_w"].shape[0]
    head_pad = _round_up(A + 1, 128)
    wh = jnp.concatenate([params["actor_w"].T, params["critic_w"].T], axis=1)   # (256, A+1)
    bh = jnp.concatenate([params["actor_b"], params["critic_b"]])[None, :]      # (1,   A+1)
    pad = head_pad - (A + 1)
    wh = jnp.pad(wh, ((0, 0), (0, pad))).astype(jnp.bfloat16)                   # (256, head_pad)
    bh = jnp.pad(bh, ((0, 0), (0, pad))).astype(jnp.float32)                    # (1,   head_pad)
    return dict(
        w1=jnp.asarray(params["fc1_w"].T, jnp.bfloat16),         # (S, 128)
        b1=jnp.asarray(params["fc1_b"][None, :], jnp.float32),   # (1, 128)
        w2=jnp.asarray(params["fc2_w"].T, jnp.bfloat16),         # (128, 256)
        b2=jnp.asarray(params["fc2_b"][None, :], jnp.float32),   # (1, 256)
        wh=wh, bh=bh,
        std=jnp.asarray(params["std"], jnp.float32),              # (A,)
    )


@jax.jit
def actor_critic_forward(state, packed):
    """Returns (mean, std, value) matching the PyTorch forward()."""
    B, S = state.shape
    A = packed["std"].shape[0]
    head_pad = packed["wh"].shape[1]

    TB = _pick_tb(B)
    grid = (pl.cdiv(B, TB),)   # ragged final block handled by Pallas masking (no jnp.pad)

    const = lambda shp: pl.BlockSpec(shp, lambda i: (0, 0))  # weights stay VMEM-resident

    out = pl.pallas_call(
        _actor_critic_kernel,
        out_shape=jax.ShapeDtypeStruct((B, head_pad), jnp.float32),
        grid=grid,
        in_specs=[
            pl.BlockSpec((TB, S), lambda i: (i, 0)),
            const(packed["w1"].shape), const(packed["b1"].shape),
            const(packed["w2"].shape), const(packed["b2"].shape),
            const(packed["wh"].shape), const(packed["bh"].shape),
        ],
        out_specs=pl.BlockSpec((TB, head_pad), lambda i: (i, 0)),
        compiler_params=pltpu.CompilerParams(dimension_semantics=("parallel",)),
    )(state, packed["w1"], packed["b1"], packed["w2"], packed["b2"],
      packed["wh"], packed["bh"])

    head = out[:, :A + 1]          # single slice of the padded slab
    mean, value = head[:, :A], head[:, A:]
    # state-independent, tiny -> plain JAX in the wrapper (no kernel operand / store)
    std = jax.nn.sigmoid(packed["std"]) * 0.3
    return mean, std, value


def init_params(key, state_dim, action_dim):
    ks = jax.random.split(key, 8)

    def lin(kw, kb, out_f, in_f):
        # Kaiming-uniform-like scale (synthetic init, not a checkpoint)
        bound = 1.0 / jnp.sqrt(jnp.float32(in_f))
        w = jax.random.uniform(kw, (out_f, in_f), jnp.float32, -bound, bound)
        b = jax.random.uniform(kb, (out_f,), jnp.float32, -bound, bound)
        return w, b

    fc1_w, fc1_b = lin(ks[0], ks[1], 128, state_dim)
    fc2_w, fc2_b = lin(ks[2], ks[3], 256, 128)
    actor_w, actor_b = lin(ks[4], ks[5], action_dim, 256)
    critic_w, critic_b = lin(ks[6], ks[7], 1, 256)
    std = jnp.zeros((action_dim,), jnp.float32)  # nn.Parameter(torch.zeros(action_dim))
    return dict(fc1_w=fc1_w, fc1_b=fc1_b, fc2_w=fc2_w, fc2_b=fc2_b,
                actor_w=actor_w, actor_b=actor_b,
                critic_w=critic_w, critic_b=critic_b, std=std)


def _reference_forward(state, params):
    h1 = jnp.maximum(state @ params["fc1_w"].T + params["fc1_b"], 0.0)
    h2 = jnp.maximum(h1 @ params["fc2_w"].T + params["fc2_b"], 0.0)
    mean = h2 @ params["actor_w"].T + params["actor_b"]
    value = h2 @ params["critic_w"].T + params["critic_b"]
    std = jax.nn.sigmoid(params["std"]) * 0.3
    return mean, std, value


if __name__ == "__main__":
    key = jax.random.PRNGKey(0)
    k_param, k_state = jax.random.split(key)

    batch, state_dim, action_dim = 8, 32, 8
    params = init_params(k_param, state_dim, action_dim)
    packed = pack_params(params)  # one-time packing, outside the jitted hot path
    state = jax.random.normal(k_state, (batch, state_dim), jnp.float32)

    mean, std, value = actor_critic_forward(state, packed)
    jax.block_until_ready((mean, std, value))

    # sanity check against pure-JAX f32 reference (bf16 matmul operands -> looser tol)
    ref_mean, ref_std, ref_value = _reference_forward(state, params)
    assert mean.shape == (batch, action_dim)
    assert std.shape == (action_dim,)
    assert value.shape == (batch, 1)
    assert jnp.allclose(mean, ref_mean, atol=2e-2, rtol=2e-2)
    assert jnp.allclose(std, ref_std, atol=1e-6, rtol=1e-6)
    assert jnp.allclose(value, ref_value, atol=2e-2, rtol=2e-2)

    # exercise the multi-tile (grid >= 2) + ragged-final-block path
    state2 = jax.random.normal(jax.random.PRNGKey(1), (200, state_dim), jnp.float32)
    mean2, std2, value2 = actor_critic_forward(state2, packed)
    jax.block_until_ready((mean2, std2, value2))
    ref_mean2, _, ref_value2 = _reference_forward(state2, params)
    assert mean2.shape == (200, action_dim) and value2.shape == (200, 1)
    assert jnp.allclose(mean2, ref_mean2, atol=2e-2, rtol=2e-2)
    assert jnp.allclose(value2, ref_value2, atol=2e-2, rtol=2e-2)

    print("KERNEL_OK")
</pallas_src>

<mosaic_0001>
module attributes {stable_mosaic.version = 11 : i64} {
  func.func @_actor_critic_kernel(%arg0: i32, %arg1: memref<8x32xf32, #tpu.memory_space<vmem>>, %arg2: memref<32x128xbf16, #tpu.memory_space<vmem>>, %arg3: memref<1x128xf32, #tpu.memory_space<vmem>>, %arg4: memref<128x256xbf16, #tpu.memory_space<vmem>>, %arg5: memref<1x256xf32, #tpu.memory_space<vmem>>, %arg6: memref<256x128xbf16, #tpu.memory_space<vmem>>, %arg7: memref<1x128xf32, #tpu.memory_space<vmem>>, %arg8: memref<8x128xf32, #tpu.memory_space<vmem>>) attributes {dimension_semantics = [#tpu.dimension_semantics<parallel>], iteration_bounds = array<i64: 1>, scalar_prefetch = 0 : i64, scratch_operands = 0 : i64, tpu.core_type = #tpu.core_type<tc>, window_params = [{transform_indices = @transform_0, window_bounds = array<i64: 8, 32>}, {pipeline_mode = #tpu.pipeline_mode<synchronous>, transform_indices = @transform_1, window_bounds = array<i64: 32, 128>}, {pipeline_mode = #tpu.pipeline_mode<synchronous>, transform_indices = @transform_2, window_bounds = array<i64: 1, 128>}, {pipeline_mode = #tpu.pipeline_mode<synchronous>, transform_indices = @transform_3, window_bounds = array<i64: 128, 256>}, {pipeline_mode = #tpu.pipeline_mode<synchronous>, transform_indices = @transform_4, window_bounds = array<i64: 1, 256>}, {pipeline_mode = #tpu.pipeline_mode<synchronous>, transform_indices = @transform_5, window_bounds = array<i64: 256, 128>}, {pipeline_mode = #tpu.pipeline_mode<synchronous>, transform_indices = @transform_6, window_bounds = array<i64: 1, 128>}, {transform_indices = @transform_7, window_bounds = array<i64: 8, 128>}]} {
    %c0 = arith.constant 0 : index
    %c0_0 = arith.constant 0 : index
    %0 = vector.load %arg1[%c0, %c0_0] : memref<8x32xf32, #tpu.memory_space<vmem>>, vector<8x32xf32>
    %1 = arith.truncf %0 : vector<8x32xf32> to vector<8x32xbf16>
    %c0_1 = arith.constant 0 : index
    %c0_2 = arith.constant 0 : index
    %2 = vector.load %arg2[%c0_1, %c0_2] : memref<32x128xbf16, #tpu.memory_space<vmem>>, vector<32x128xbf16>
    %cst = arith.constant dense<0.000000e+00> : vector<8x128xf32>
    %3 = tpu.matmul %1, %2, %cst {dimension_numbers = #tpu.dot_dimension_numbers<[1], [0], [0], [1], [0, 0, 1, 1], [], []>} : vector<8x32xbf16>, vector<32x128xbf16>, vector<8x128xf32> -> vector<8x128xf32>
    %c0_3 = arith.constant 0 : index
    %c0_4 = arith.constant 0 : index
    %4 = vector.load %arg3[%c0_3, %c0_4] : memref<1x128xf32, #tpu.memory_space<vmem>>, vector<1x128xf32>
    %5 = vector.broadcast %4 : vector<1x128xf32> to vector<8x128xf32>
    %6 = arith.addf %3, %5 : vector<8x128xf32>
    %cst_5 = arith.constant 0.000000e+00 : f32
    %7 = vector.broadcast %cst_5 : f32 to vector<8x128xf32>
    %8 = arith.maximumf %6, %7 : vector<8x128xf32>
    %9 = arith.truncf %8 : vector<8x128xf32> to vector<8x128xbf16>
    %c0_6 = arith.constant 0 : index
    %c0_7 = arith.constant 0 : index
    %10 = vector.load %arg4[%c0_6, %c0_7] : memref<128x256xbf16, #tpu.memory_space<vmem>>, vector<128x256xbf16>
    %cst_8 = arith.constant dense<0.000000e+00> : vector<8x256xf32>
    %11 = tpu.matmul %9, %10, %cst_8 {dimension_numbers = #tpu.dot_dimension_numbers<[1], [0], [0], [1], [0, 0, 1, 1], [], []>} : vector<8x128xbf16>, vector<128x256xbf16>, vector<8x256xf32> -> vector<8x256xf32>
    %c0_9 = arith.constant 0 : index
    %c0_10 = arith.constant 0 : index
    %12 = vector.load %arg5[%c0_9, %c0_10] : memref<1x256xf32, #tpu.memory_space<vmem>>, vector<1x256xf32>
    %13 = vector.broadcast %12 : vector<1x256xf32> to vector<8x256xf32>
    %14 = arith.addf %11, %13 : vector<8x256xf32>
    %cst_11 = arith.constant 0.000000e+00 : f32
    %15 = vector.broadcast %cst_11 : f32 to vector<8x256xf32>
    %16 = arith.maximumf %14, %15 : vector<8x256xf32>
    %17 = arith.truncf %16 : vector<8x256xf32> to vector<8x256xbf16>
    %c0_12 = arith.constant 0 : index
    %c0_13 = arith.constant 0 : index
    %18 = vector.load %arg6[%c0_12, %c0_13] : memref<256x128xbf16, #tpu.memory_space<vmem>>, vector<256x128xbf16>
    %cst_14 = arith.constant dense<0.000000e+00> : vector<8x128xf32>
    %19 = tpu.matmul %17, %18, %cst_14 {dimension_numbers = #tpu.dot_dimension_numbers<[1], [0], [0], [1], [0, 0, 1, 1], [], []>} : vector<8x256xbf16>, vector<256x128xbf16>, vector<8x128xf32> -> vector<8x128xf32>
    %c0_15 = arith.constant 0 : index
    %c0_16 = arith.constant 0 : index
    %20 = vector.load %arg7[%c0_15, %c0_16] : memref<1x128xf32, #tpu.memory_space<vmem>>, vector<1x128xf32>
    %21 = vector.broadcast %20 : vector<1x128xf32> to vector<8x128xf32>
    %22 = arith.addf %19, %21 : vector<8x128xf32>
    %c0_17 = arith.constant 0 : index
    %c0_18 = arith.constant 0 : index
    %23 = vector.load %arg8[%c0_17, %c0_18] : memref<8x128xf32, #tpu.memory_space<vmem>>, vector<8x128xf32>
    tpu.vector_store %arg8[%c0_17, %c0_18], %22 {strides = array<i32>} : memref<8x128xf32, #tpu.memory_space<vmem>>, vector<8x128xf32>,
    return
  }
  func.func @transform_0(%arg0: i32) -> (i32, i32) {
    %c0_i32 = arith.constant 0 : i32
    %c0_i32_0 = arith.constant 0 : i32
    return %arg0, %c0_i32 : i32, i32
  }
  func.func @transform_1(%arg0: i32) -> (i32, i32) {
    %c0_i32 = arith.constant 0 : i32
    %c0_i32_0 = arith.constant 0 : i32
    %c0_i32_1 = arith.constant 0 : i32
    return %c0_i32, %c0_i32_0 : i32, i32
  }
  func.func @transform_2(%arg0: i32) -> (i32, i32) {
    %c0_i32 = arith.constant 0 : i32
    %c0_i32_0 = arith.constant 0 : i32
    %c0_i32_1 = arith.constant 0 : i32
    return %c0_i32, %c0_i32_0 : i32, i32
  }
  func.func @transform_3(%arg0: i32) -> (i32, i32) {
    %c0_i32 = arith.constant 0 : i32
    %c0_i32_0 = arith.constant 0 : i32
    %c0_i32_1 = arith.constant 0 : i32
    return %c0_i32, %c0_i32_0 : i32, i32
  }
  func.func @transform_4(%arg0: i32) -> (i32, i32) {
    %c0_i32 = arith.constant 0 : i32
    %c0_i32_0 = arith.constant 0 : i32
    %c0_i32_1 = arith.constant 0 : i32
    return %c0_i32, %c0_i32_0 : i32, i32
  }
  func.func @transform_5(%arg0: i32) -> (i32, i32) {
    %c0_i32 = arith.constant 0 : i32
    %c0_i32_0 = arith.constant 0 : i32
    %c0_i32_1 = arith.constant 0 : i32
    return %c0_i32, %c0_i32_0 : i32, i32
  }
  func.func @transform_6(%arg0: i32) -> (i32, i32) {
    %c0_i32 = arith.constant 0 : i32
    %c0_i32_0 = arith.constant 0 : i32
    %c0_i32_1 = arith.constant 0 : i32
    return %c0_i32, %c0_i32_0 : i32, i32
  }
  func.func @transform_7(%arg0: i32) -> (i32, i32) {
    %c0_i32 = arith.constant 0 : i32
    %c0_i32_0 = arith.constant 0 : i32
    return %arg0, %c0_i32 : i32, i32
  }
}

</mosaic_0001>

<llo_original>
// kernel: actor_critic_forward.1
$region0: #{actor_critic_forward.1}
  #allocation0 [shape = 'u32[]', space=smem, size = 0x4, offset = 0x4, fixed_abs, tag = 'smem constant byte address 0x4 - core index']
  #allocation1 [shape = 'u32[144,128]{1,0:T(1,128)}', space=vmem, size = 0x12000, scoped, tag = 'internal scratch']
  %s0 = inlined_call_operand.hbm [shape: f32[8,32], index: 0, kind: input, shape index: {}]
  %s1 = inlined_call_operand.hbm [shape: bf16[32,128], index: 1, kind: input, shape index: {}]
  %s2 = inlined_call_operand.vmem [shape: f32[1,128], index: 2, kind: input, shape index: {}]
  %s3 = inlined_call_operand.hbm [shape: bf16[128,256], index: 3, kind: input, shape index: {}]
  %s4 = inlined_call_operand.vmem [shape: f32[1,256], index: 4, kind: input, shape index: {}]
  %s5 = inlined_call_operand.hbm [shape: bf16[256,128], index: 5, kind: input, shape index: {}]
  %s6 = inlined_call_operand.vmem [shape: f32[1,128], index: 6, kind: input, shape index: {}]
  %s7 = inlined_call_operand.vmem [shape: f32[8,128], index: 7, kind: output, shape index: {}]
  %s8 = sld [smem:[#allocation0]]
  $region54: #{actor_critic_forward.1} parent=0
    _
  %s10 = ssub.s32 1, %s8
  %s11 = scalar_select 0, %s10, %s8
  $region1: #{actor_critic_forward.1} parent=0
    #allocation2 [shape = 'u8[4096]{0}', space=vmem, size = 0x1000, scoped, tag = 'input window, operand 0, single buffered']
    #allocation3 [shape = 's32[1]{0}', space=sflag, size = 0x4, scoped, tag = 'scoped memory for actor_critic_forward.1']
    #allocation4 [shape = 'u8[8192]{0}', space=vmem, size = 0x2000, scoped, tag = 'input window, operand 1, single buffered']
    #allocation5 [shape = 's32[1]{0}', space=sflag, size = 0x4, scoped, tag = 'scoped memory for actor_critic_forward.1']
    #allocation6 [shape = 'u8[65536]{0}', space=vmem, size = 0x10000, scoped, tag = 'input window, operand 3, single buffered']
    #allocation7 [shape = 'u8[65536]{0}', space=vmem, size = 0x10000, scoped, tag = 'input window, operand 5, single buffered']
    #allocation8 [shape = 's32[1]{0}', space=sflag, size = 0x4, scoped, tag = 'scoped memory for actor_critic_forward.1']
    %12 = vsyncpa [#allocation3], 0
    %13 = vsyncpa [#allocation5], 0
    %14 = vsyncpa [#allocation8], 0
    // Predicated region
    $region2: #{actor_critic_forward.1} parent=1 // pred_check
      _
    $region3: #{actor_critic_forward.1} parent=1 // pred_check_branch
      %16 = sbr.rel (0) target = $region5
    $region4: #{actor_critic_forward.1} parent=1 // pred_region
      %s18 = ssub.s32 128, 128
      %19 = vsyncadd [#allocation3], %s18
      %s21 = sshll.u32 [#allocation2], 4
      %s22 = int_to_ptr.vmem [resolvable:$true] %s21
      %24 = dma.hbm_to_vmem [thread:$0]  %s0, 128, %s22, [#allocation3]
    $region5: #{actor_critic_forward.1} parent=1 // pred_fallthru
      _
    // Predicated region
    $region6: #{actor_critic_forward.1} parent=1 // pred_check
      _
    $region7: #{actor_critic_forward.1} parent=1 // pred_check_branch
      %26 = sbr.rel (0) target = $region9
    $region8: #{actor_critic_forward.1} parent=1 // pred_region
      %s28 = ssub.s32 256, 256
      %29 = vsyncadd [#allocation5], %s28
      %s30 = sshll.u32 [#allocation4], 4
      %s31 = int_to_ptr.vmem [resolvable:$true] %s30
      %36 = dma.hbm_to_vmem [thread:$0]  %s1, 256, %s31, [#allocation5], 64, 64, 4
    $region9: #{actor_critic_forward.1} parent=1 // pred_fallthru
      _
    // Predicated region
    $region10: #{actor_critic_forward.1} parent=1 // pred_check
      _
    $region11: #{actor_critic_forward.1} parent=1 // pred_check_branch
      %38 = sbr.rel (0) target = $region13
    $region12: #{actor_critic_forward.1} parent=1 // pred_region
      _
    $region13: #{actor_critic_forward.1} parent=1 // pred_fallthru
      _
    // Predicated region
    $region14: #{actor_critic_forward.1} parent=1 // pred_check
      _
    $region15: #{actor_critic_forward.1} parent=1 // pred_check_branch
      %40 = sbr.rel (0) target = $region17
    $region16: #{actor_critic_forward.1} parent=1 // pred_region
      %s42 = ssub.s32 2048, 2048
      %43 = vsyncadd [#allocation5], %s42
      %s44 = sshll.u32 [#allocation6], 4
      %s45 = int_to_ptr.vmem [resolvable:$true] %s44
      %50 = dma.hbm_to_vmem [thread:$0]  %s3, 2048, %s45, [#allocation5], 128, 128, 8
    $region17: #{actor_critic_forward.1} parent=1 // pred_fallthru
      _
    // Predicated region
    $region18: #{actor_critic_forward.1} parent=1 // pred_check
      _
    $region19: #{actor_critic_forward.1} parent=1 // pred_check_branch
      %52 = sbr.rel (0) target = $region21
    $region20: #{actor_critic_forward.1} parent=1 // pred_region
      _
    $region21: #{actor_critic_forward.1} parent=1 // pred_fallthru
      _
    // Predicated region
    $region22: #{actor_critic_forward.1} parent=1 // pred_check
      _
    $region23: #{actor_critic_forward.1} parent=1 // pred_check_branch
      %54 = sbr.rel (0) target = $region25
    $region24: #{actor_critic_forward.1} parent=1 // pred_region
      %s56 = ssub.s32 2048, 2048
      %57 = vsyncadd [#allocation8], %s56
      %s58 = sshll.u32 [#allocation7], 4
      %s59 = int_to_ptr.vmem [resolvable:$true] %s58
      %64 = dma.hbm_to_vmem [thread:$0]  %s5, 2048, %s59, [#allocation8], 64, 64, 4
    $region25: #{actor_critic_forward.1} parent=1 // pred_fallthru
      _
    // Predicated region
    $region26: #{actor_critic_forward.1} parent=1 // pred_check
      _
    $region27: #{actor_critic_forward.1} parent=1 // pred_check_branch
      %66 = sbr.rel (0) target = $region29
    $region28: #{actor_critic_forward.1} parent=1 // pred_region
      _
    $region29: #{actor_critic_forward.1} parent=1 // pred_fallthru
      _
    // Predicated region
    $region30: #{actor_critic_forward.1} parent=1 // pred_check
      _
    $region31: #{actor_critic_forward.1} parent=1 // pred_check_branch
      %68 = sbr.rel (0) target = $region33
    $region32: #{actor_critic_forward.1} parent=1 // pred_region
      %69 = dma.done [#allocation3], 128
    $region33: #{actor_critic_forward.1} parent=1 // pred_fallthru
      _
    // Predicated region
    $region34: #{actor_critic_forward.1} parent=1 // pred_check
      _
    $region35: #{actor_critic_forward.1} parent=1 // pred_check_branch
      %71 = sbr.rel (0) target = $region37
    $region36: #{actor_critic_forward.1} parent=1 // pred_region
      %72 = dma.done [#allocation5], 256
    $region37: #{actor_critic_forward.1} parent=1 // pred_fallthru
      _
    // Predicated region
    $region38: #{actor_critic_forward.1} parent=1 // pred_check
      _
    $region39: #{actor_critic_forward.1} parent=1 // pred_check_branch
      %74 = sbr.rel (0) target = $region41
    $region40: #{actor_critic_forward.1} parent=1 // pred_region
      %75 = dma.done [#allocation5], 2048
    $region41: #{actor_critic_forward.1} parent=1 // pred_fallthru
      _
    // Predicated region
    $region42: #{actor_critic_forward.1} parent=1 // pred_check
      _
    $region43: #{actor_critic_forward.1} parent=1 // pred_check_branch
      %77 = sbr.rel (0) target = $region45
    $region44: #{actor_critic_forward.1} parent=1 // pred_region
      %78 = dma.done [#allocation8], 2048
    $region45: #{actor_critic_forward.1} parent=1 // pred_fallthru
      _
    %v80 = vld [vmem:[#allocation2] sm:$0xff]
    %v81 = vpack.c.bf16 %v80, %v80
    %v82 = vld [vmem:[#allocation4] sm:$0xf]
    %v83 = vld [vmem:[#allocation4 + $0x4] sm:$0xf]
    %v84 = vld [vmem:[#allocation4 + $0x8] sm:$0xf]
    %v85 = vld [vmem:[#allocation4 + $0xc] sm:$0xf]
    %v86 = vld [vmem:[%s2] sm:$0x1]
    %v88 = vlaneseq
    %v89 = vshrl.u32 %v88, 7
    %v90 = vsub.s32 0, %v89
    %v91 = vrot.slane %v86, %v90
    %v97 = vunpack.c.l.b16 %v82
    %v98 = vunpack.c.l.b16 %v83
    %v99 = vunpack.c.l.b16 %v84
    %v100 = vunpack.c.l.b16 %v85
    %v101 = vpack.c.b16 %v98, %v97
    %v102 = vpack.c.b16 %v100, %v99
    %vm105 = vcmask 261120
    %v107 = vsel %vm105, %v81, 0
    %109 = vmatprep.subr.bf16.mxu0 0
    %110 = vmatpush1.bf16.msra.mxu0 %v101
    %111 = vmatprep.subr.bf16.mxu0 0
    %112 = vmatpush1.bf16.msra.mxu0 %v102
    %113 = vmatprep.subr.bf16.mxu0 0
    %114 = vmatpush1.bf16.msra.mxu0 0
    %115 = vmatprep.subr.bf16.mxu0 0
    %116 = vmatpush1.bf16.msra.mxu0 0
    %117 = vmatprep.subr.bf16.mxu0 0
    %118 = vmatpush1.bf16.msra.mxu0 0
    %119 = vmatprep.subr.bf16.mxu0 0
    %120 = vmatpush1.bf16.msra.mxu0 0
    %121 = vmatprep.subr.bf16.mxu0 0
    %122 = vmatpush1.bf16.msra.mxu0 0
    %123 = vmatprep.subr.bf16.mxu0 0
    %124 = vmatpush1.bf16.msra.mxu0 0
    %125 = vmatprep.subr.bf16.mxu0 0
    %126 = vmatpush1.bf16.msra.mxu0 0
    %127 = vmatprep.subr.bf16.mxu0 0
    %128 = vmatpush1.bf16.msra.mxu0 0
    %129 = vmatprep.subr.bf16.mxu0 0
    %130 = vmatpush1.bf16.msra.mxu0 0
    %131 = vmatprep.subr.bf16.mxu0 0
    %132 = vmatpush1.bf16.msra.mxu0 0
    %133 = vmatprep.subr.bf16.mxu0 0
    %134 = vmatpush1.bf16.msra.mxu0 0
    %135 = vmatprep.subr.bf16.mxu0 0
    %136 = vmatpush1.bf16.msra.mxu0 0
    %137 = vmatprep.subr.bf16.mxu0 0
    %138 = vmatpush1.bf16.msra.mxu0 0
    %139 = vmatprep.subr.bf16.mxu0 0
    %140 = vmatpush1.bf16.msra.mxu0 0
    %141 = vmatprep.mubr.bf16.mxu0 0
    %142 = vmatmul.mubr.bf16.gmra.mrb[0].mxu0 %v107
    %v143 = vpop.f32.mrb[0].mxu0
    %v144 = vadd.f32 %v91, %v143
    %v145 = vpop.f32.mrb[0].mxu0
    %v146 = vpop.f32.mrb[0].mxu0
    %v147 = vpop.f32.mrb[0].mxu0
    %148 = vdwg.mxu0
    %v149 = vmax.f32 %v144, 0.0
    %v150 = vpack.c.bf16 %v149, %v149
    %v151 = vld [vmem:[#allocation6] sm:$0xff]
    %v152 = vld [vmem:[#allocation6 + $0x8] sm:$0xff]
    %v153 = vld [vmem:[#allocation6 + $0x10] sm:$0xff]
    %v154 = vld [vmem:[#allocation6 + $0x18] sm:$0xff]
    %v155 = vld [vmem:[#allocation6 + $0x20] sm:$0xff]
    %v156 = vld [vmem:[#allocation6 + $0x28] sm:$0xff]
    %v157 = vld [vmem:[#allocation6 + $0x30] sm:$0xff]
    %v158 = vld [vmem:[#allocation6 + $0x38] sm:$0xff]
    %v159 = vld [vmem:[#allocation6 + $0x40] sm:$0xff]
    %v160 = vld [vmem:[#allocation6 + $0x48] sm:$0xff]
    %v161 = vld [vmem:[#allocation6 + $0x50] sm:$0xff]
    %v162 = vld [vmem:[#allocation6 + $0x58] sm:$0xff]
    %v163 = vld [vmem:[#allocation6 + $0x60] sm:$0xff]
    %v164 = vld [vmem:[#allocation6 + $0x68] sm:$0xff]
    %v165 = vld [vmem:[#allocation6 + $0x70] sm:$0xff]
    %v166 = vld [vmem:[#allocation6 + $0x78] sm:$0xff]
    %v167 = vld [vmem:[%s4] sm:$0x3]
    %v169 = vlaneseq
    %v170 = vshrl.u32 %v169, 7
    %v171 = vsub.s32 0, %v170
    %v172 = vrot.slane %v167, %v171
    %v173 = vlaneseq
    %v174 = vshrl.u32 %v173, 7
    %v175 = vsub.s32 1, %v174
    %v176 = vrot.slane %v167, %v175
    %v195 = vunpack.c.l.b16 %v151
    %v196 = vunpack.c.h.b16 %v151
    %v197 = vunpack.c.l.b16 %v152
    %v198 = vunpack.c.h.b16 %v152
    %v199 = vunpack.c.l.b16 %v153
    %v200 = vunpack.c.h.b16 %v153
    %v201 = vunpack.c.l.b16 %v154
    %v202 = vunpack.c.h.b16 %v154
    %v203 = vunpack.c.l.b16 %v155
    %v204 = vunpack.c.h.b16 %v155
    %v205 = vunpack.c.l.b16 %v156
    %v206 = vunpack.c.h.b16 %v156
    %v207 = vunpack.c.l.b16 %v157
    %v208 = vunpack.c.h.b16 %v157
    %v209 = vunpack.c.l.b16 %v158
    %v210 = vunpack.c.h.b16 %v158
    %v211 = vunpack.c.l.b16 %v159
    %v212 = vunpack.c.h.b16 %v159
    %v213 = vunpack.c.l.b16 %v160
    %v214 = vunpack.c.h.b16 %v160
    %v215 = vunpack.c.l.b16 %v161
    %v216 = vunpack.c.h.b16 %v161
    %v217 = vunpack.c.l.b16 %v162
    %v218 = vunpack.c.h.b16 %v162
    %v219 = vunpack.c.l.b16 %v163
    %v220 = vunpack.c.h.b16 %v163
    %v221 = vunpack.c.l.b16 %v164
    %v222 = vunpack.c.h.b16 %v164
    %v223 = vunpack.c.l.b16 %v165
    %v224 = vunpack.c.h.b16 %v165
    %v225 = vunpack.c.l.b16 %v166
    %v226 = vunpack.c.h.b16 %v166
    %v227 = vpack.c.b16 %v197, %v195
    %v228 = vpack.c.b16 %v198, %v196
    %v229 = vpack.c.b16 %v201, %v199
    %v230 = vpack.c.b16 %v202, %v200
    %v231 = vpack.c.b16 %v205, %v203
    %v232 = vpack.c.b16 %v206, %v204
    %v233 = vpack.c.b16 %v209, %v207
    %v234 = vpack.c.b16 %v210, %v208
    %v235 = vpack.c.b16 %v213, %v211
    %v236 = vpack.c.b16 %v214, %v212
    %v237 = vpack.c.b16 %v217, %v215
    %v238 = vpack.c.b16 %v218, %v216
    %v239 = vpack.c.b16 %v221, %v219
    %v240 = vpack.c.b16 %v222, %v220
    %v241 = vpack.c.b16 %v225, %v223
    %v242 = vpack.c.b16 %v226, %v224
    %259 = vmatprep.subr.bf16.mxu0 %v228
    %260 = vmatpush1.bf16.msra.mxu0 %v227
    %261 = vmatprep.subr.bf16.mxu0 %v230
    %262 = vmatpush1.bf16.msra.mxu0 %v229
    %263 = vmatprep.subr.bf16.mxu0 %v232
    %264 = vmatpush1.bf16.msra.mxu0 %v231
    %265 = vmatprep.subr.bf16.mxu0 %v234
    %266 = vmatpush1.bf16.msra.mxu0 %v233
    %267 = vmatprep.subr.bf16.mxu0 %v236
    %268 = vmatpush1.bf16.msra.mxu0 %v235
    %269 = vmatprep.subr.bf16.mxu0 %v238
    %270 = vmatpush1.bf16.msra.mxu0 %v237
    %271 = vmatprep.subr.bf16.mxu0 %v240
    %272 = vmatpush1.bf16.msra.mxu0 %v239
    %273 = vmatprep.subr.bf16.mxu0 %v242
    %274 = vmatpush1.bf16.msra.mxu0 %v241
    %275 = vmatprep.subr.bf16.mxu0 0
    %276 = vmatpush1.bf16.msra.mxu0 0
    %277 = vmatprep.subr.bf16.mxu0 0
    %278 = vmatpush1.bf16.msra.mxu0 0
    %279 = vmatprep.subr.bf16.mxu0 0
    %280 = vmatpush1.bf16.msra.mxu0 0
    %281 = vmatprep.subr.bf16.mxu0 0
    %282 = vmatpush1.bf16.msra.mxu0 0
    %283 = vmatprep.subr.bf16.mxu0 0
    %284 = vmatpush1.bf16.msra.mxu0 0
    %285 = vmatprep.subr.bf16.mxu0 0
    %286 = vmatpush1.bf16.msra.mxu0 0
    %287 = vmatprep.subr.bf16.mxu0 0
    %288 = vmatpush1.bf16.msra.mxu0 0
    %289 = vmatprep.subr.bf16.mxu0 0
    %290 = vmatpush1.bf16.msra.mxu0 0
    %291 = vmatprep.mubr.bf16.mxu0 0
    %292 = vmatmul.mubr.bf16.gmra.mrb[0].mxu0 %v150
    %v293 = vpop.f32.mrb[0].mxu0
    %v294 = vadd.f32 %v172, %v293
    %v295 = vpop.f32.mrb[0].mxu0
    %v296 = vadd.f32 %v176, %v295
    %v297 = vpop.f32.mrb[0].mxu0
    %v298 = vpop.f32.mrb[0].mxu0
    %299 = vdwg.mxu0
    %v300 = vmax.f32 %v294, 0.0
    %v301 = vmax.f32 %v296, 0.0
    %v302 = vpack.c.bf16 %v300, %v300
    %v303 = vpack.c.bf16 %v301, %v301
    %v304 = vld [vmem:[#allocation7] sm:$0xf]
    %v305 = vld [vmem:[#allocation7 + $0x4] sm:$0xf]
    %v306 = vld [vmem:[#allocation7 + $0x8] sm:$0xf]
    %v307 = vld [vmem:[#allocation7 + $0xc] sm:$0xf]
    %v308 = vld [vmem:[#allocation7 + $0x10] sm:$0xf]
    %v309 = vld [vmem:[#allocation7 + $0x14] sm:$0xf]
    %v310 = vld [vmem:[#allocation7 + $0x18] sm:$0xf]
    %v311 = vld [vmem:[#allocation7 + $0x1c] sm:$0xf]
    %v312 = vld [vmem:[#allocation7 + $0x20] sm:$0xf]
    %v313 = vld [vmem:[#allocation7 + $0x24] sm:$0xf]
    %v314 = vld [vmem:[#allocation7 + $0x28] sm:$0xf]
    %v315 = vld [vmem:[#allocation7 + $0x2c] sm:$0xf]
    %v316 = vld [vmem:[#allocation7 + $0x30] sm:$0xf]
    %v317 = vld [vmem:[#allocation7 + $0x34] sm:$0xf]
    %v318 = vld [vmem:[#allocation7 + $0x38] sm:$0xf]
    %v319 = vld [vmem:[#allocation7 + $0x3c] sm:$0xf]
    %v320 = vld [vmem:[#allocation7 + $0x40] sm:$0xf]
    %v321 = vld [vmem:[#allocation7 + $0x44] sm:$0xf]
    %v322 = vld [vmem:[#allocation7 + $0x48] sm:$0xf]
    %v323 = vld [vmem:[#allocation7 + $0x4c] sm:$0xf]
    %v324 = vld [vmem:[#allocation7 + $0x50] sm:$0xf]
    %v325 = vld [vmem:[#allocation7 + $0x54] sm:$0xf]
    %v326 = vld [vmem:[#allocation7 + $0x58] sm:$0xf]
    %v327 = vld [vmem:[#allocation7 + $0x5c] sm:$0xf]
    %v328 = vld [vmem:[#allocation7 + $0x60] sm:$0xf]
    %v329 = vld [vmem:[#allocation7 + $0x64] sm:$0xf]
    %v330 = vld [vmem:[#allocation7 + $0x68] sm:$0xf]
    %v331 = vld [vmem:[#allocation7 + $0x6c] sm:$0xf]
    %v332 = vld [vmem:[#allocation7 + $0x70] sm:$0xf]
    %v333 = vld [vmem:[#allocation7 + $0x74] sm:$0xf]
    %v334 = vld [vmem:[#allocation7 + $0x78] sm:$0xf]
    %v335 = vld [vmem:[#allocation7 + $0x7c] sm:$0xf]
    %v336 = vld [vmem:[%s6] sm:$0x1]
    %v338 = vlaneseq
    %v339 = vshrl.u32 %v338, 7
    %v340 = vsub.s32 0, %v339
    %v341 = vrot.slane %v336, %v340
    %v375 = vunpack.c.l.b16 %v304
    %v376 = vunpack.c.l.b16 %v305
    %v377 = vunpack.c.l.b16 %v306
    %v378 = vunpack.c.l.b16 %v307
    %v379 = vunpack.c.l.b16 %v308
    %v380 = vunpack.c.l.b16 %v309
    %v381 = vunpack.c.l.b16 %v310
    %v382 = vunpack.c.l.b16 %v311
    %v383 = vunpack.c.l.b16 %v312
    %v384 = vunpack.c.l.b16 %v313
    %v385 = vunpack.c.l.b16 %v314
    %v386 = vunpack.c.l.b16 %v315
    %v387 = vunpack.c.l.b16 %v316
    %v388 = vunpack.c.l.b16 %v317
    %v389 = vunpack.c.l.b16 %v318
    %v390 = vunpack.c.l.b16 %v319
    %v391 = vunpack.c.l.b16 %v320
    %v392 = vunpack.c.l.b16 %v321
    %v393 = vunpack.c.l.b16 %v322
    %v394 = vunpack.c.l.b16 %v323
    %v395 = vunpack.c.l.b16 %v324
    %v396 = vunpack.c.l.b16 %v325
    %v397 = vunpack.c.l.b16 %v326
    %v398 = vunpack.c.l.b16 %v327
    %v399 = vunpack.c.l.b16 %v328
    %v400 = vunpack.c.l.b16 %v329
    %v401 = vunpack.c.l.b16 %v330
    %v402 = vunpack.c.l.b16 %v331
    %v403 = vunpack.c.l.b16 %v332
    %v404 = vunpack.c.l.b16 %v333
    %v405 = vunpack.c.l.b16 %v334
    %v406 = vunpack.c.l.b16 %v335
    %v407 = vpack.c.b16 %v376, %v375
    %v408 = vpack.c.b16 %v378, %v377
    %v409 = vpack.c.b16 %v380, %v379
    %v410 = vpack.c.b16 %v382, %v381
    %v411 = vpack.c.b16 %v384, %v383
    %v412 = vpack.c.b16 %v386, %v385
    %v413 = vpack.c.b16 %v388, %v387
    %v414 = vpack.c.b16 %v390, %v389
    %v415 = vpack.c.b16 %v392, %v391
    %v416 = vpack.c.b16 %v394, %v393
    %v417 = vpack.c.b16 %v396, %v395
    %v418 = vpack.c.b16 %v398, %v397
    %v419 = vpack.c.b16 %v400, %v399
    %v420 = vpack.c.b16 %v402, %v401
    %v421 = vpack.c.b16 %v404, %v403
    %v422 = vpack.c.b16 %v406, %v405
    %439 = vmatprep.subr.bf16.mxu0 0
    %440 = vmatpush1.bf16.msra.mxu0 %v407
    %441 = vmatprep.subr.bf16.mxu0 0
    %442 = vmatpush1.bf16.msra.mxu0 %v408
    %443 = vmatprep.subr.bf16.mxu0 0
    %444 = vmatpush1.bf16.msra.mxu0 %v409
    %445 = vmatprep.subr.bf16.mxu0 0
    %446 = vmatpush1.bf16.msra.mxu0 %v410
    %447 = vmatprep.subr.bf16.mxu0 0
    %448 = vmatpush1.bf16.msra.mxu0 %v411
    %449 = vmatprep.subr.bf16.mxu0 0
    %450 = vmatpush1.bf16.msra.mxu0 %v412
    %451 = vmatprep.subr.bf16.mxu0 0
    %452 = vmatpush1.bf16.msra.mxu0 %v413
    %453 = vmatprep.subr.bf16.mxu0 0
    %454 = vmatpush1.bf16.msra.mxu0 %v414
    %455 = vmatprep.subr.bf16.mxu0 0
    %456 = vmatpush1.bf16.msra.mxu0 %v415
    %457 = vmatprep.subr.bf16.mxu0 0
    %458 = vmatpush1.bf16.msra.mxu0 %v416
    %459 = vmatprep.subr.bf16.mxu0 0
    %460 = vmatpush1.bf16.msra.mxu0 %v417
    %461 = vmatprep.subr.bf16.mxu0 0
    %462 = vmatpush1.bf16.msra.mxu0 %v418
    %463 = vmatprep.subr.bf16.mxu0 0
    %464 = vmatpush1.bf16.msra.mxu0 %v419
    %465 = vmatprep.subr.bf16.mxu0 0
    %466 = vmatpush1.bf16.msra.mxu0 %v420
    %467 = vmatprep.subr.bf16.mxu0 0
    %468 = vmatpush1.bf16.msra.mxu0 %v421
    %469 = vmatprep.subr.bf16.mxu0 0
    %470 = vmatpush1.bf16.msra.mxu0 %v422
    %471 = vmatprep.mubr.bf16.mxu0 %v303
    %472 = vmatmul.mubr.bf16.gmra.mrb[0].mxu0 %v302
    %v473 = vpop.f32.mrb[0].mxu0
    %v474 = vadd.f32 %v341, %v473
    %v475 = vpop.f32.mrb[0].mxu0
    %v476 = vpop.f32.mrb[0].mxu0
    %v477 = vpop.f32.mrb[0].mxu0
    %478 = vdwg.mxu0
    %479 = vst [vmem:[%s7] sm:$0xff] %v474
    // Predicated region
    $region46: #{actor_critic_forward.1} parent=1 // pred_check
      _
    $region47: #{actor_critic_forward.1} parent=1 // pred_check_branch
      %481 = sbr.rel (0) target = $region49
    $region48: #{actor_critic_forward.1} parent=1 // pred_region
      _
    $region49: #{actor_critic_forward.1} parent=1 // pred_fallthru
      _
    // Predicated region
    $region50: #{actor_critic_forward.1} parent=1 // pred_check
      _
    $region51: #{actor_critic_forward.1} parent=1 // pred_check_branch
      %483 = sbr.rel (0) target = $region53
    $region52: #{actor_critic_forward.1} parent=1 // pred_region
      _
    $region53: #{actor_critic_forward.1} parent=1 // pred_fallthru
      _
    %484 = vsyncpa [#allocation3], 1
    %485 = vsyncpa [#allocation5], 1
    %486 = vsyncpa [#allocation8], 1

</llo_original>
